<compile_context>
chip_gen: v5e
topology: v5e:2x2
jax: 0.10.0
libtpu: 0.0.40
codegen_flags: <defaults>
</compile_context>

<pallas_src>
import functools

import jax
import jax.numpy as jnp
from jax.experimental import pallas as pl
from jax.experimental.pallas import tpu as pltpu

LANES = 128                 # vreg lane width (last dim)
SUBLANES = 8                # vreg sublane count (second-to-last dim)
DEFAULT_BLOCK_ROWS = 1024   # (1024, 128) f32 = 512 KiB per input per pipeline buffer


def _weighted_mse_kernel(inv_n, periodic_w, w_ref, pred_ref, target_ref, out_ref, acc_ref):
    """Per grid step: fold one lane-dense tile of (weighted) squared diffs into an
    (8, 128) f32 VMEM accumulator; reduce to a scalar and scale by 1/(B*F) on the
    last step only."""
    pid = pl.program_id(0)

    @pl.when(pid == 0)
    def _init():
        acc_ref[...] = jnp.zeros_like(acc_ref)

    # Upcast AFTER the load so HBM->VMEM traffic stays in the input dtype.
    diff = pred_ref[...].astype(jnp.float32) - target_ref[...].astype(jnp.float32)
    sq = diff * diff
    if not periodic_w:
        # General-F fallback: full per-element weight map tile (same layout as data).
        sq = w_ref[...] * sq
    # (block_rows, 128) -> (block_rows//8, 8, 128) -> sum over leading axis:
    # pure VPU vreg adds, no cross-lane traffic.
    acc_ref[...] += sq.reshape(-1, SUBLANES, LANES).sum(axis=0)

    @pl.when(pid == pl.num_programs(0) - 1)
    def _finalize():
        acc = acc_ref[...]
        if periodic_w:
            # Weight depends only on the lane when F | 128: apply once here.
            acc = acc * w_ref[...]            # (1, 128) broadcasts over 8 sublanes
        out_ref[0, 0] = jnp.sum(acc) * jnp.float32(inv_n)


def weighted_mse_loss(pred: jax.Array, target: jax.Array, weights: jax.Array,
                      *, block_rows: int = DEFAULT_BLOCK_ROWS) -> jax.Array:
    """Pallas equivalent of WeightedMSELoss.forward. Returns a scalar f32."""
    assert pred.shape == target.shape and pred.ndim == 2
    B, F = pred.shape
    assert weights.shape == (F,)
    n = B * F
    w32 = weights.astype(jnp.float32)

    # Lane-dense tiling: flatten to (rows_pad, 128), zero-padded.
    rows = -(-n // LANES)                               # ceil(n / 128)
    br = min(block_rows, rows)
    br = -(-br // SUBLANES) * SUBLANES                  # round up to multiple of 8
    rows_pad = -(-rows // br) * br                      # multiple of the block height
    pad = rows_pad * LANES - n

    def to_tiles(x):
        flat = x.reshape(-1)
        if pad:
            flat = jnp.pad(flat, (0, pad))              # zeros -> zero contribution
        return flat.reshape(rows_pad, LANES)

    pred2d = to_tiles(pred)        # native dtype preserved
    target2d = to_tiles(target)

    periodic_w = (LANES % F == 0)
    if periodic_w:
        # Weight depends only on lane index: one resident (1, 128) row,
        # w_row[l] = weights[l % F]; applied once at finalize.
        w_op = jnp.tile(w32, LANES // F).reshape(1, LANES)
        w_spec = pl.BlockSpec((1, LANES), lambda i: (0, 0))
    else:
        # General fallback: full zero-padded weight map with the same layout as the data.
        w_op = to_tiles(jnp.broadcast_to(w32[None, :], (B, F)))
        w_spec = pl.BlockSpec((br, LANES), lambda i: (i, 0))

    grid = (rows_pad // br,)

    out = pl.pallas_call(
        functools.partial(_weighted_mse_kernel, 1.0 / float(n), periodic_w),
        out_shape=jax.ShapeDtypeStruct((1, 1), jnp.float32),
        grid=grid,
        in_specs=[
            w_spec,
            pl.BlockSpec((br, LANES), lambda i: (i, 0)),
            pl.BlockSpec((br, LANES), lambda i: (i, 0)),
        ],
        out_specs=pl.BlockSpec(memory_space=pltpu.SMEM),
        scratch_shapes=[pltpu.VMEM((SUBLANES, LANES), jnp.float32)],
        compiler_params=pltpu.CompilerParams(
            dimension_semantics=("arbitrary",)),
    )(w_op, pred2d, target2d)
    return out[0, 0]


def weighted_mse_loss_ref(pred, target, weights):
    # Pure-JAX reference (mirrors the PyTorch forward; compute in f32).
    p = pred.astype(jnp.float32)
    t = target.astype(jnp.float32)
    w_exp = jnp.broadcast_to(weights.astype(jnp.float32)[None, :], p.shape)
    return jnp.mean(w_exp * (p - t) ** 2)


if __name__ == "__main__":
    key = jax.random.PRNGKey(0)
    k1, k2, k3, k4 = jax.random.split(key, 4)

    # Module-default shapes: batch of predictions, F=2 features/weights.
    B, F = 64, 2
    pred = jax.random.normal(k1, (B, F), dtype=jnp.float32)
    target = jax.random.normal(k2, (B, F), dtype=jnp.float32)
    # Non-trivial weights to actually exercise the weighting (module default is [1., 1.]).
    weights = jnp.array([1.0, 2.0], dtype=jnp.float32)

    loss = weighted_mse_loss(pred, target, weights)
    jax.block_until_ready(loss)
    ref = weighted_mse_loss_ref(pred, target, weights)
    assert jnp.allclose(loss, ref, rtol=1e-6, atol=1e-6), (loss, ref)

    # Larger batch in bf16 with a tiny block to exercise the multi-step grid,
    # the VMEM accumulator carry, and the in-kernel upcast path.
    B2 = 2048
    pred2 = jax.random.normal(k3, (B2, F), dtype=jnp.bfloat16)
    target2 = jax.random.normal(k4, (B2, F), dtype=jnp.bfloat16)
    loss2 = weighted_mse_loss(pred2, target2, weights, block_rows=8)
    jax.block_until_ready(loss2)
    ref2 = weighted_mse_loss_ref(pred2, target2, weights)
    assert jnp.allclose(loss2, ref2, rtol=1e-5, atol=1e-6), (loss2, ref2)

    # Non-power-of-two feature count (F=3 does not divide 128) exercises the
    # general per-element weight-map fallback path.
    B3, F3 = 200, 3
    pred3 = jax.random.normal(k1, (B3, F3), dtype=jnp.float32)
    target3 = jax.random.normal(k2, (B3, F3), dtype=jnp.float32)
    weights3 = jnp.array([0.5, 1.0, 2.0], dtype=jnp.float32)
    loss3 = weighted_mse_loss(pred3, target3, weights3)
    jax.block_until_ready(loss3)
    ref3 = weighted_mse_loss_ref(pred3, target3, weights3)
    assert jnp.allclose(loss3, ref3, rtol=1e-6, atol=1e-6), (loss3, ref3)

    print("KERNEL_OK")
</pallas_src>

<mosaic_0001>
module attributes {stable_mosaic.version = 11 : i64} {
  func.func @_weighted_mse_kernel(%arg0: i32, %arg1: memref<1x128xf32, #tpu.memory_space<vmem>>, %arg2: memref<8x128xf32, #tpu.memory_space<vmem>>, %arg3: memref<8x128xf32, #tpu.memory_space<vmem>>, %arg4: memref<1x1xf32, #tpu.memory_space<smem>>, %arg5: memref<8x128xf32, #tpu.memory_space<vmem>>) attributes {dimension_semantics = [#tpu.dimension_semantics<arbitrary>], iteration_bounds = array<i64: 1>, scalar_prefetch = 0 : i64, scratch_operands = 1 : i64, tpu.core_type = #tpu.core_type<tc>, window_params = [{pipeline_mode = #tpu.pipeline_mode<synchronous>, transform_indices = @transform_0, window_bounds = array<i64: 1, 128>}, {transform_indices = @transform_1, window_bounds = array<i64: 8, 128>}, {transform_indices = @transform_2, window_bounds = array<i64: 8, 128>}, {transform_indices = @transform_3, window_bounds = array<i64: 1, 1>}]} {
    %c0_i32 = arith.constant 0 : i32
    %0 = arith.cmpi eq, %arg0, %c0_i32 : i32
    %1 = arith.extui %0 : i1 to i32
    %c0_i32_0 = arith.constant 0 : i32
    %2 = arith.cmpi ne, %1, %c0_i32_0 : i32
    scf.if %2 {
      %cst_10 = arith.constant 0.000000e+00 : f32
      %15 = vector.broadcast %cst_10 : f32 to vector<8x128xf32>
      %c0_11 = arith.constant 0 : index
      %c0_12 = arith.constant 0 : index
      %16 = vector.load %arg5[%c0_11, %c0_12] : memref<8x128xf32, #tpu.memory_space<vmem>>, vector<8x128xf32>
      tpu.vector_store %arg5[%c0_11, %c0_12], %15 {strides = array<i32>} : memref<8x128xf32, #tpu.memory_space<vmem>>, vector<8x128xf32>,
    } else {
    }
    %c0 = arith.constant 0 : index
    %c0_1 = arith.constant 0 : index
    %3 = vector.load %arg2[%c0, %c0_1] : memref<8x128xf32, #tpu.memory_space<vmem>>, vector<8x128xf32>
    %c0_2 = arith.constant 0 : index
    %c0_3 = arith.constant 0 : index
    %4 = vector.load %arg3[%c0_2, %c0_3] : memref<8x128xf32, #tpu.memory_space<vmem>>, vector<8x128xf32>
    %5 = arith.subf %3, %4 : vector<8x128xf32>
    %6 = arith.mulf %5, %5 : vector<8x128xf32>
    %c0_4 = arith.constant 0 : index
    %c0_5 = arith.constant 0 : index
    %7 = vector.load %arg5[%c0_4, %c0_5] : memref<8x128xf32, #tpu.memory_space<vmem>>, vector<8x128xf32>
    %8 = vector.shape_cast %6 : vector<8x128xf32> to vector<1x8x128xf32>
    %cst = arith.constant dense<0.000000e+00> : vector<8x128xf32>
    %9 = vector.multi_reduction <add>, %8, %cst [0] : vector<1x8x128xf32> to vector<8x128xf32>
    %10 = arith.addf %7, %9 : vector<8x128xf32>
    %c0_6 = arith.constant 0 : index
    %c0_7 = arith.constant 0 : index
    %11 = vector.load %arg5[%c0_6, %c0_7] : memref<8x128xf32, #tpu.memory_space<vmem>>, vector<8x128xf32>
    tpu.vector_store %arg5[%c0_6, %c0_7], %10 {strides = array<i32>} : memref<8x128xf32, #tpu.memory_space<vmem>>, vector<8x128xf32>,
    %c0_i32_8 = arith.constant 0 : i32
    %12 = arith.cmpi eq, %arg0, %c0_i32_8 : i32
    %13 = arith.extui %12 : i1 to i32
    %c0_i32_9 = arith.constant 0 : i32
    %14 = arith.cmpi ne, %13, %c0_i32_9 : i32
    scf.if %14 {
      %c0_10 = arith.constant 0 : index
      %c0_11 = arith.constant 0 : index
      %15 = vector.load %arg5[%c0_10, %c0_11] : memref<8x128xf32, #tpu.memory_space<vmem>>, vector<8x128xf32>
      %c0_12 = arith.constant 0 : index
      %c0_13 = arith.constant 0 : index
      %16 = vector.load %arg1[%c0_12, %c0_13] : memref<1x128xf32, #tpu.memory_space<vmem>>, vector<1x128xf32>
      %17 = vector.broadcast %16 : vector<1x128xf32> to vector<8x128xf32>
      %18 = arith.mulf %15, %17 : vector<8x128xf32>
      %19 = vector.shape_cast %18 : vector<8x128xf32> to vector<1x8x128xf32>
      %cst_14 = arith.constant dense<0.000000e+00> : vector<1xf32>
      %20 = vector.multi_reduction <add>, %19, %cst_14 [1, 2] : vector<1x8x128xf32> to vector<1xf32>
      %21 = vector.shape_cast %20 : vector<1xf32> to vector<1x1x1xf32>
      %22 = vector.extract %21[0, 0, 0] : f32 from vector<1x1x1xf32>
      %cst_15 = arith.constant 7.812500e-03 : f32
      %23 = arith.mulf %22, %cst_15 : f32
      %c0_16 = arith.constant 0 : index
      %c0_17 = arith.constant 0 : index
      %24 = memref.load %arg4[%c0_16, %c0_17] : memref<1x1xf32, #tpu.memory_space<smem>>
      memref.store %23, %arg4[%c0_16, %c0_17] : memref<1x1xf32, #tpu.memory_space<smem>>
    } else {
    }
    return
  }
  func.func @transform_0(%arg0: i32) -> (i32, i32) {
    %c0_i32 = arith.constant 0 : i32
    %c0_i32_0 = arith.constant 0 : i32
    %c0_i32_1 = arith.constant 0 : i32
    return %c0_i32, %c0_i32_0 : i32, i32
  }
  func.func @transform_1(%arg0: i32) -> (i32, i32) {
    %c0_i32 = arith.constant 0 : i32
    %c0_i32_0 = arith.constant 0 : i32
    return %arg0, %c0_i32 : i32, i32
  }
  func.func @transform_2(%arg0: i32) -> (i32, i32) {
    %c0_i32 = arith.constant 0 : i32
    %c0_i32_0 = arith.constant 0 : i32
    return %arg0, %c0_i32 : i32, i32
  }
  func.func @transform_3(%arg0: i32) -> (i32, i32) {
    %c0_i32 = arith.constant 0 : i32
    %c0_i32_0 = arith.constant 0 : i32
    %c0_i32_1 = arith.constant 0 : i32
    return %c0_i32, %c0_i32_0 : i32, i32
  }
}

</mosaic_0001>

<llo_original>
// kernel: tpu_custom_call.1
$region0: #{tpu_custom_call.1}
  #allocation0 [shape = 'u32[]', space=smem, size = 0x4, offset = 0x4, fixed_abs, tag = 'smem constant byte address 0x4 - core index']
  #allocation1 [shape = 'u32[72,128]{1,0:T(1,128)}', space=vmem, size = 0x9000, scoped, tag = 'internal scratch']
  #allocation2 [shape = 'f32[8,128]{1,0:T(8,128)}', space=vmem, size = 0x1000, scoped, tag = 'scratch operand']
  %s0 = inlined_call_operand.hbm [shape: f32[1,128], index: 0, kind: input, shape index: {}]
  %s1 = inlined_call_operand.hbm [shape: f32[8,128], index: 1, kind: input, shape index: {}]
  %s2 = inlined_call_operand.hbm [shape: f32[8,128], index: 2, kind: input, shape index: {}]
  %s3 = inlined_call_operand.hbm [shape: f32[1,1], index: 3, kind: output, shape index: {}]
  %s4 = sld [smem:[#allocation0]]
  $region42: #{tpu_custom_call.1} parent=0
    _
  %s6 = ssub.s32 1, %s4
  %s7 = scalar_select 0, %s6, %s4
  $region1: #{tpu_custom_call.1} parent=0
    #allocation3 [shape = 'u8[512]{0}', space=vmem, size = 0x400, scoped, tag = 'input window, operand 0, single buffered']
    #allocation4 [shape = 's32[1]{0}', space=sflag, size = 0x4, scoped, tag = 'scoped memory for tpu_custom_call.1']
    #allocation5 [shape = 's32[1]{0}', space=sflag, size = 0x4, scoped, tag = 'scoped memory for tpu_custom_call.1']
    #allocation6 [shape = 'u8[4096]{0}', space=vmem, size = 0x1000, scoped, tag = 'input window, operand 1, single buffered']
    #allocation7 [shape = 's32[1]{0}', space=sflag, size = 0x4, scoped, tag = 'scoped memory for tpu_custom_call.1']
    #allocation8 [shape = 'u8[4096]{0}', space=vmem, size = 0x1000, scoped, tag = 'input window, operand 2, single buffered']
    #allocation9 [shape = 'u8[512]{0}', space=smem, size = 0x200, scoped, tag = 'output window, operand 0, single buffered']
    %8 = vsyncpa [#allocation4], 0
    %9 = vsyncpa [#allocation7], 0
    %10 = vsyncpa [#allocation5], 0
    // Predicated region
    $region2: #{tpu_custom_call.1} parent=1 // pred_check
      _
    $region3: #{tpu_custom_call.1} parent=1 // pred_check_branch
      %12 = sbr.rel (0) target = $region5
    $region4: #{tpu_custom_call.1} parent=1 // pred_region
      %14 = vsyncadd [#allocation4], 0
      %s16 = sshll.u32 %s0, 4
      %s17 = int_to_ptr.hbm [resolvable:$true] %s16
      %s18 = sshll.u32 [#allocation3], 4
      %s19 = int_to_ptr.vmem [resolvable:$true] %s18
      %21 = dma.hbm_to_vmem [thread:$0]  %s17, 16, %s19, [#allocation4]
    $region5: #{tpu_custom_call.1} parent=1 // pred_fallthru
      _
    // Predicated region
    $region6: #{tpu_custom_call.1} parent=1 // pred_check
      _
    $region7: #{tpu_custom_call.1} parent=1 // pred_check_branch
      %23 = sbr.rel (0) target = $region9
    $region8: #{tpu_custom_call.1} parent=1 // pred_region
      %25 = vsyncadd [#allocation7], 0
      %s27 = sshll.u32 %s1, 4
      %s28 = int_to_ptr.hbm [resolvable:$true] %s27
      %s29 = sshll.u32 [#allocation6], 4
      %s30 = int_to_ptr.vmem [resolvable:$true] %s29
      %32 = dma.hbm_to_vmem [thread:$0]  %s28, 128, %s30, [#allocation7]
    $region9: #{tpu_custom_call.1} parent=1 // pred_fallthru
      _
    // Predicated region
    $region10: #{tpu_custom_call.1} parent=1 // pred_check
      _
    $region11: #{tpu_custom_call.1} parent=1 // pred_check_branch
      %34 = sbr.rel (0) target = $region13
    $region12: #{tpu_custom_call.1} parent=1 // pred_region
      %36 = vsyncadd [#allocation7], 0
      %s38 = sshll.u32 %s2, 4
      %s39 = int_to_ptr.hbm [resolvable:$true] %s38
      %s40 = sshll.u32 [#allocation8], 4
      %s41 = int_to_ptr.vmem [resolvable:$true] %s40
      %43 = dma.hbm_to_vmem [thread:$0]  %s39, 128, %s41, [#allocation7]
    $region13: #{tpu_custom_call.1} parent=1 // pred_fallthru
      _
    // Predicated region
    $region14: #{tpu_custom_call.1} parent=1 // pred_check
      _
    $region15: #{tpu_custom_call.1} parent=1 // pred_check_branch
      %45 = sbr.rel (0) target = $region17
    $region16: #{tpu_custom_call.1} parent=1 // pred_region
      %47 = dma.done [#allocation4], 16
    $region17: #{tpu_custom_call.1} parent=1 // pred_fallthru
      _
    // Predicated region
    $region18: #{tpu_custom_call.1} parent=1 // pred_check
      _
    $region19: #{tpu_custom_call.1} parent=1 // pred_check_branch
      %49 = sbr.rel (0) target = $region21
    $region20: #{tpu_custom_call.1} parent=1 // pred_region
      %51 = dma.done [#allocation7], 128
    $region21: #{tpu_custom_call.1} parent=1 // pred_fallthru
      _
    // Predicated region
    $region22: #{tpu_custom_call.1} parent=1 // pred_check
      _
    $region23: #{tpu_custom_call.1} parent=1 // pred_check_branch
      %53 = sbr.rel (0) target = $region25
    $region24: #{tpu_custom_call.1} parent=1 // pred_region
      %55 = dma.done [#allocation7], 128
    $region25: #{tpu_custom_call.1} parent=1 // pred_fallthru
      _
    %p56 = scmp.eq.s32.totalorder 0, 0
    // Predicated region
    $region26: #{tpu_custom_call.1} parent=1 // pred_check
      %p57 = pneg %p56
    $region27: #{tpu_custom_call.1} parent=1 // pred_check_branch
      %59 = sbr.rel (%p57) target = $region29
    $region28: #{tpu_custom_call.1} parent=1 // pred_region
      %60 = vst [vmem:[#allocation2] sm:$0xff] 0.0
    $region29: #{tpu_custom_call.1} parent=1 // pred_fallthru
      _
    %v61 = vld [vmem:[#allocation6] sm:$0xff]
    %v62 = vld [vmem:[#allocation8] sm:$0xff]
    %v63 = vsub.f32 %v61, %v62
    %v64 = vmul.f32 %v63, %v63
    %v65 = vld [vmem:[#allocation2] sm:$0xff]
    %v66 = vadd.f32 %v64, 0.0
    %v67 = vadd.f32 %v65, %v66
    %68 = vst [vmem:[#allocation2] sm:$0xff] %v67
    // Predicated region
    $region30: #{tpu_custom_call.1} parent=1 // pred_check
      %p69 = pneg %p56
    $region31: #{tpu_custom_call.1} parent=1 // pred_check_branch
      %71 = sbr.rel (%p69) target = $region33
    $region32: #{tpu_custom_call.1} parent=1 // pred_region
      %v72 = vld [vmem:[#allocation2] sm:$0xff]
      %v73 = vld [vmem:[#allocation3] sm:$0x1]
      %v75 = vperm.slane %v73, 0
      %v77 = vmul.f32 %v72, %v75
      %78 = vadd.xlane.f32.xlu0 %v77
      %v79 = vpop.xlane.xlu0 %78
      %v80 = vrot.slane %v79, 4
      %v81 = vadd.f32 %v79, %v80
      %v82 = vrot.slane %v81, 2
      %v83 = vadd.f32 %v81, %v82
      %v84 = vrot.slane %v83, 1
      %v85 = vadd.f32 %v83, %v84
      %s86 = vtos %v85
      %s87 = smul.f32 %s86, 0.0078125
      %s88 = scalar_lea.smem [#allocation9], 0
      %89 = sst [smem:[%s88]] %s87
    $region33: #{tpu_custom_call.1} parent=1 // pred_fallthru
      _
    // Predicated region
    $region34: #{tpu_custom_call.1} parent=1 // pred_check
      _
    $region35: #{tpu_custom_call.1} parent=1 // pred_check_branch
      %91 = sbr.rel (0) target = $region37
    $region36: #{tpu_custom_call.1} parent=1 // pred_region
      %93 = vsyncadd [#allocation5], 0
      %s95 = sshll.u32 %s3, 4
      %s96 = int_to_ptr.hbm [resolvable:$true] %s95
      %98 = dma.smem_to_hbm [#allocation9], 16, %s96, [#allocation5]
    $region37: #{tpu_custom_call.1} parent=1 // pred_fallthru
      _
    // Predicated region
    $region38: #{tpu_custom_call.1} parent=1 // pred_check
      _
    $region39: #{tpu_custom_call.1} parent=1 // pred_check_branch
      %100 = sbr.rel (0) target = $region41
    $region40: #{tpu_custom_call.1} parent=1 // pred_region
      %102 = dma.done [#allocation5], 16
    $region41: #{tpu_custom_call.1} parent=1 // pred_fallthru
      _
    %103 = sfence
    %104 = vsyncpa [#allocation4], 1
    %105 = vsyncpa [#allocation7], 1
    %106 = vsyncpa [#allocation5], 1

</llo_original>
